<compile_context>
chip_gen: v7x
topology: tpu7x:2x2x1
jax: 0.10.0
libtpu: 0.0.40
codegen_flags: <defaults>
</compile_context>

<pallas_src>
import functools

import jax
import jax.numpy as jnp
from jax import lax
from jax.experimental import pallas as pl
from jax.experimental.pallas import tpu as pltpu

ALPHA = 0.2            # LeakyReLU negative slope
NEG_BIG = -9e15        # same masking constant as the PyTorch module


def _round_up(x, m):
    return ((x + m - 1) // m) * m


def _vmem_limit_bytes():
    """Per-generation scoped-VMEM limit (conservative if query fails)."""
    cap = None
    try:
        info = pltpu.get_tpu_info()
        cap = getattr(info, "vmem_capacity_bytes", None)
    except Exception:
        cap = None
    if cap is None:
        cap = 64 * 1024 * 1024                      # assume v7x-like (64 MiB/TC)
    if cap >= 120 * 1024 * 1024:                    # v5e / v6e: 128 MiB
        return 100 * 1024 * 1024
    return min(56 * 1024 * 1024, int(cap * 7 // 8))  # v7x / unknown small parts


# --------------------------------------------------------------------------- #
# Kernel 1: projection + per-node score terms (computed once, row-tiled)
# --------------------------------------------------------------------------- #
def _project_kernel(x_ref, w_ref, a1_ref, a2_ref, h_ref, f1_ref, f2_ref):
    # h = X @ W for this row tile (f32 in-register, stored bf16 to halve HBM)
    h = jnp.dot(x_ref[...], w_ref[...], preferred_element_type=jnp.float32)
    h_ref[...] = h.astype(jnp.bfloat16)
    # source term f1_i = h_i . a[:F]        -> (tm, 1)
    f1_ref[...] = jnp.dot(h, a1_ref[...], preferred_element_type=jnp.float32)
    # target term f2_j = h_j . a[F:] as a (1, tm) lane-dense ROW
    f2_ref[...] = lax.dot_general(a2_ref[...], h, (((1,), (1,)), ((), ())),
                                  preferred_element_type=jnp.float32)


# --------------------------------------------------------------------------- #
# Kernel 2: masked attention + aggregation with online softmax (block-sparse)
# --------------------------------------------------------------------------- #
def _attn_kernel(blk_ref, cnt_ref, adj_ref, hk_ref, f1_ref, f2_ref, o_ref,
                 m_sc, l_sc, acc_sc, *, tn, nkt, hk_resident):
    i = pl.program_id(0)
    j = pl.program_id(1)

    @pl.when(j == 0)
    def _init():
        m_sc[...] = jnp.full_like(m_sc, -jnp.inf)
        l_sc[...] = jnp.zeros_like(l_sc)
        acc_sc[...] = jnp.zeros_like(acc_sc)

    # Only key tiles that contain at least one edge are visited; skipped steps
    # repeat the previous block index (no DMA) and do no compute.
    @pl.when(j < cnt_ref[i])
    def _compute():
        # e_ij = LeakyReLU(f1_i + f2_j), then mask non-edges (int8 stream)
        e = f1_ref[...] + f2_ref[...]                  # (tm,1)+(1,tn) -> (tm,tn)
        e = jnp.maximum(e, ALPHA * e)                  # LeakyReLU, single max
        e = jnp.where(adj_ref[...] != 0, e, NEG_BIG)

        # online (flash-style) softmax; normalization deferred to the epilogue
        m_new = jnp.maximum(m_sc[...], jnp.max(e, axis=-1, keepdims=True))
        corr = jnp.exp(m_sc[...] - m_new)
        p = jnp.exp(e - m_new)
        l_sc[...] = corr * l_sc[...] + jnp.sum(p, axis=-1, keepdims=True)
        if hk_resident:
            kb = blk_ref[i * nkt + j]                  # key-tile index (SMEM)
            start = pl.multiple_of(kb * tn, tn)
            hk = hk_ref[pl.ds(start, tn), :]           # slice resident H (bf16)
        else:
            hk = hk_ref[...]                           # streamed key tile (bf16)
        acc_sc[...] = corr * acc_sc[...] + jnp.dot(
            p.astype(jnp.bfloat16), hk, preferred_element_type=jnp.float32)
        m_sc[...] = m_new

    # TODO(synk): F.dropout(attention, p, training=self.training) is identity at
    # inference (training=False), so it is intentionally skipped here.
    @pl.when(j == pl.num_programs(1) - 1)
    def _finalize():
        l = l_sc[...]
        has = l > 0.0                                  # rows whose every key
        l_safe = jnp.where(has, l, 1.0)                # tile was skipped -> 0
        inv_l = pl.reciprocal(l_safe, approx=True)     # EUP slot
        inv_l = inv_l * (2.0 - l_safe * inv_l)         # 1 Newton step -> ~f32 exact
        hp = jnp.where(has, acc_sc[...] * inv_l, 0.0)
        # ELU (concat=True branch); clamp so the unselected exp never overflows
        o_ref[...] = jnp.where(hp > 0, hp, jnp.exp(jnp.minimum(hp, 0.0)) - 1.0)


# --------------------------------------------------------------------------- #
# Wrapper
# --------------------------------------------------------------------------- #
def gat_forward(x, W, a, adj, *, tm=256, tn=512):
    """concat=True branch of GraphAttentionLayer.forward (inference)."""
    N, F_in = x.shape
    F_out = W.shape[1]
    Fp = _round_up(F_out, 128)                 # lane-dense feature width

    # Tile selection: clamp to the padded problem size, keep tm | tn | N_pad.
    rN = _round_up(N, 128)
    tm = max(128, min(tm, rN))
    tn = max(tm, (min(tn, rN) // tm) * tm)
    N_pad = _round_up(N, tn)
    nrt, nkt = N_pad // tm, N_pad // tn

    vmem_limit = _vmem_limit_bytes()
    # Keep H (bf16) resident in VMEM when it (double-buffered) + the tile
    # working set comfortably fits the per-generation budget.
    hk_bytes = N_pad * Fp * 2
    ws_base = (2 * tm * tn                 # adj int8 (double-buffered)
               + 4 * tm * tn * 4           # e/p temporaries (estimate)
               + 3 * tm * Fp * 4           # output (x2) + f32 accumulator
               + 8 * (tm + tn)             # f1 / f2 tiles
               + (4 << 20))                # headroom
    hk_resident = (ws_base + 2 * hk_bytes) <= vmem_limit

    # zero-pad: padded W/a columns are zero -> scores & outputs unchanged;
    # padded nodes have no edges -> zero attention weight for real rows.
    x_p = jnp.zeros((N_pad, F_in), jnp.float32).at[:N, :].set(x.astype(jnp.float32))
    W_p = jnp.zeros((F_in, Fp), jnp.float32).at[:, :F_out].set(W.astype(jnp.float32))
    a1_p = jnp.zeros((Fp, 1), jnp.float32).at[:F_out, :].set(a[:F_out].astype(jnp.float32))
    a2_p = jnp.zeros((1, Fp), jnp.float32).at[:, :F_out].set(a[F_out:].astype(jnp.float32).T)
    adj_i8 = jnp.zeros((N_pad, N_pad), jnp.int8).at[:N, :N].set((adj > 0).astype(jnp.int8))
    # TODO(synk): a real row with zero edges softmaxes uniformly over the visited
    # padded keys instead of over N (PyTorch); degenerate case, never happens
    # with self-loops, matches the reference otherwise.

    # Block-sparsity table for scalar prefetch: per row tile, the compacted list
    # of key tiles that contain at least one edge (padded by repeating the last
    # valid index so skipped grid steps trigger no new DMA) plus the count.
    blk_any = jnp.any(adj_i8.reshape(nrt, tm, nkt, tn) != 0, axis=(1, 3))
    cnt = blk_any.sum(axis=1).astype(jnp.int32)                     # (nrt,)
    jidx = jnp.arange(nkt, dtype=jnp.int32)
    order = jnp.argsort(jnp.where(blk_any, jidx[None, :], nkt + jidx[None, :]),
                        axis=1).astype(jnp.int32)                   # nonzero first
    last = jnp.take_along_axis(order, jnp.maximum(cnt - 1, 0)[:, None], axis=1)
    blk_tbl = jnp.where(jidx[None, :] < cnt[:, None], order, last)
    blk_tbl = blk_tbl.reshape(-1).astype(jnp.int32)                 # 1-D SMEM table

    # ---- kernel 1: h = X@W (bf16), f1, f2 (once) -------------------------- #
    h, f1, f2 = pl.pallas_call(
        _project_kernel,
        out_shape=(jax.ShapeDtypeStruct((N_pad, Fp), jnp.bfloat16),
                   jax.ShapeDtypeStruct((N_pad, 1), jnp.float32),
                   jax.ShapeDtypeStruct((1, N_pad), jnp.float32)),
        grid_spec=pltpu.PrefetchScalarGridSpec(
            num_scalar_prefetch=0,
            grid=(N_pad // tm,),
            in_specs=[pl.BlockSpec((tm, F_in), lambda i: (i, 0)),
                      pl.BlockSpec((F_in, Fp), lambda i: (0, 0)),
                      pl.BlockSpec((Fp, 1), lambda i: (0, 0)),
                      pl.BlockSpec((1, Fp), lambda i: (0, 0))],
            out_specs=(pl.BlockSpec((tm, Fp), lambda i: (i, 0)),
                       pl.BlockSpec((tm, 1), lambda i: (i, 0)),
                       pl.BlockSpec((1, tm), lambda i: (0, i)))),
        compiler_params=pltpu.CompilerParams(
            dimension_semantics=("parallel",),
            vmem_limit_bytes=vmem_limit),
    )(x_p, W_p, a1_p, a2_p)

    # ---- kernel 2: block-sparse masked softmax + aggregation -------------- #
    if hk_resident:
        hk_spec = pl.BlockSpec((N_pad, Fp), lambda i, j, bt, ct: (0, 0))
    else:
        hk_spec = pl.BlockSpec((tn, Fp), lambda i, j, bt, ct: (bt[i * nkt + j], 0))

    h_stream_bytes = hk_bytes if hk_resident else nrt * hk_bytes
    cost = pl.CostEstimate(
        flops=2 * N_pad * N_pad * Fp + 10 * N_pad * N_pad,
        transcendentals=N_pad * N_pad,                  # dense upper bound
        bytes_accessed=N_pad * N_pad                    # adj mask (int8)
                       + h_stream_bytes                 # H (bf16)
                       + N_pad * (Fp + 2) * 4)          # f1/f2/output

    kernel2 = functools.partial(_attn_kernel, tn=tn, nkt=nkt,
                                hk_resident=hk_resident)

    out_pad = pl.pallas_call(
        kernel2,
        out_shape=jax.ShapeDtypeStruct((N_pad, Fp), jnp.float32),
        grid_spec=pltpu.PrefetchScalarGridSpec(
            num_scalar_prefetch=2,                       # blk_tbl, cnt -> SMEM
            grid=(nrt, nkt),
            in_specs=[pl.BlockSpec((tm, tn),
                                   lambda i, j, bt, ct: (i, bt[i * nkt + j])),
                      hk_spec,
                      pl.BlockSpec((tm, 1), lambda i, j, bt, ct: (i, 0)),
                      pl.BlockSpec((1, tn),
                                   lambda i, j, bt, ct: (0, bt[i * nkt + j]))],
            out_specs=pl.BlockSpec((tm, Fp), lambda i, j, bt, ct: (i, 0)),
            scratch_shapes=[pltpu.VMEM((tm, 1), jnp.float32),        # m_i
                            pltpu.VMEM((tm, 1), jnp.float32),        # l_i
                            pltpu.VMEM((tm, Fp), jnp.float32)]),     # acc (f32)
        compiler_params=pltpu.CompilerParams(
            dimension_semantics=("parallel", "arbitrary"),
            vmem_limit_bytes=vmem_limit),
        cost_estimate=cost,
    )(blk_tbl, cnt, adj_i8, h, f1, f2)

    return out_pad[:N, :F_out]


# --------------------------------------------------------------------------- #
# Pure-JAX reference mirroring the PyTorch code literally
# --------------------------------------------------------------------------- #
def gat_ref(x, W, a, adj):
    h = x @ W
    N, F_out = h.shape
    a_input = jnp.concatenate(
        [jnp.repeat(h, N, axis=0), jnp.tile(h, (N, 1))], axis=1
    ).reshape(N, N, 2 * F_out)
    e = a_input @ a[:, 0]
    e = jnp.where(e > 0, e, ALPHA * e)
    e = jnp.where(adj > 0, e, NEG_BIG)
    attn = jax.nn.softmax(e, axis=1)
    return jax.nn.elu(attn @ h)


if __name__ == "__main__":
    key = jax.random.PRNGKey(0)

    def xavier_uniform(k, shape, gain=1.414):
        fan_in, fan_out = shape
        bound = gain * jnp.sqrt(6.0 / (fan_in + fan_out))
        return jax.random.uniform(k, shape, jnp.float32, -bound, bound)

    ok = True

    # ---- test 1: small dense-ish graph ------------------------------------ #
    N, F_in, F_out = 16, 8, 32
    k1, k2, k3, k4 = jax.random.split(key, 4)
    W = xavier_uniform(k1, (F_in, F_out))
    a = xavier_uniform(k2, (2 * F_out, 1))
    x = jax.random.normal(k3, (N, F_in), jnp.float32)
    adj = (jax.random.uniform(k4, (N, N)) > 0.5).astype(jnp.float32)
    adj = adj.at[jnp.arange(N), jnp.arange(N)].set(1.0)   # self-loops

    out = gat_forward(x, W, a, adj)
    jax.block_until_ready(out)
    ref = gat_ref(x, W, a, adj)
    ok &= out.shape == (N, F_out)
    ok &= bool(jnp.allclose(out, ref, atol=1e-2, rtol=1e-2))

    # ---- test 2: two-community graph (multi-tile + block-sparse skipping) -- #
    N2 = 300
    k5, k6 = jax.random.split(k4)
    x2 = jax.random.normal(k5, (N2, F_in), jnp.float32)
    comm = (jnp.arange(N2) < 256)
    adj2 = (comm[:, None] == comm[None, :]).astype(jnp.float32)  # incl. self-loops

    out2 = gat_forward(x2, W, a, adj2)
    jax.block_until_ready(out2)
    ref2 = gat_ref(x2, W, a, adj2)
    ok &= out2.shape == (N2, F_out)
    ok &= bool(jnp.allclose(out2, ref2, atol=1e-2, rtol=1e-2))

    assert ok, "mismatch vs JAX reference"
    print("KERNEL_OK")
</pallas_src>

<mosaic_0001>
module attributes {stable_mosaic.version = 11 : i64} {
  func.func @_project_kernel(%arg0: i32, %arg1: memref<128x8xf32, #tpu.memory_space<vmem>>, %arg2: memref<8x128xf32, #tpu.memory_space<vmem>>, %arg3: memref<128x1xf32, #tpu.memory_space<vmem>>, %arg4: memref<1x128xf32, #tpu.memory_space<vmem>>, %arg5: memref<128x128xbf16, #tpu.memory_space<vmem>>, %arg6: memref<128x1xf32, #tpu.memory_space<vmem>>, %arg7: memref<1x128xf32, #tpu.memory_space<vmem>>) attributes {dimension_semantics = [#tpu.dimension_semantics<parallel>], iteration_bounds = array<i64: 1>, scalar_prefetch = 0 : i64, scratch_operands = 0 : i64, tpu.core_type = #tpu.core_type<tc>, window_params = [{transform_indices = @transform_0, window_bounds = array<i64: 128, 8>}, {pipeline_mode = #tpu.pipeline_mode<synchronous>, transform_indices = @transform_1, window_bounds = array<i64: 8, 128>}, {pipeline_mode = #tpu.pipeline_mode<synchronous>, transform_indices = @transform_2, window_bounds = array<i64: 128, 1>}, {pipeline_mode = #tpu.pipeline_mode<synchronous>, transform_indices = @transform_3, window_bounds = array<i64: 1, 128>}, {transform_indices = @transform_4, window_bounds = array<i64: 128, 128>}, {transform_indices = @transform_5, window_bounds = array<i64: 128, 1>}, {transform_indices = @transform_6, window_bounds = array<i64: 1, 128>}]} {
    %c0 = arith.constant 0 : index
    %c0_0 = arith.constant 0 : index
    %0 = vector.load %arg1[%c0, %c0_0] : memref<128x8xf32, #tpu.memory_space<vmem>>, vector<128x8xf32>
    %c0_1 = arith.constant 0 : index
    %c0_2 = arith.constant 0 : index
    %1 = vector.load %arg2[%c0_1, %c0_2] : memref<8x128xf32, #tpu.memory_space<vmem>>, vector<8x128xf32>
    %cst = arith.constant dense<0.000000e+00> : vector<128x128xf32>
    %2 = tpu.matmul %0, %1, %cst {dimension_numbers = #tpu.dot_dimension_numbers<[1], [0], [0], [1], [0, 0, 1, 1], [], []>} : vector<128x8xf32>, vector<8x128xf32>, vector<128x128xf32> -> vector<128x128xf32>
    %3 = arith.truncf %2 : vector<128x128xf32> to vector<128x128xbf16>
    %c0_3 = arith.constant 0 : index
    %c0_4 = arith.constant 0 : index
    %4 = vector.load %arg5[%c0_3, %c0_4] : memref<128x128xbf16, #tpu.memory_space<vmem>>, vector<128x128xbf16>
    tpu.vector_store %arg5[%c0_3, %c0_4], %3 {strides = array<i32>} : memref<128x128xbf16, #tpu.memory_space<vmem>>, vector<128x128xbf16>,
    %c0_5 = arith.constant 0 : index
    %c0_6 = arith.constant 0 : index
    %5 = vector.load %arg3[%c0_5, %c0_6] : memref<128x1xf32, #tpu.memory_space<vmem>>, vector<128x1xf32>
    %cst_7 = arith.constant dense<0.000000e+00> : vector<128x1xf32>
    %6 = tpu.matmul %2, %5, %cst_7 {dimension_numbers = #tpu.dot_dimension_numbers<[1], [0], [0], [1], [0, 0, 1, 1], [], []>} : vector<128x128xf32>, vector<128x1xf32>, vector<128x1xf32> -> vector<128x1xf32>
    %c0_8 = arith.constant 0 : index
    %c0_9 = arith.constant 0 : index
    %7 = vector.load %arg6[%c0_8, %c0_9] : memref<128x1xf32, #tpu.memory_space<vmem>>, vector<128x1xf32>
    tpu.vector_store %arg6[%c0_8, %c0_9], %6 {strides = array<i32>} : memref<128x1xf32, #tpu.memory_space<vmem>>, vector<128x1xf32>,
    %c0_10 = arith.constant 0 : index
    %c0_11 = arith.constant 0 : index
    %8 = vector.load %arg4[%c0_10, %c0_11] : memref<1x128xf32, #tpu.memory_space<vmem>>, vector<1x128xf32>
    %cst_12 = arith.constant dense<0.000000e+00> : vector<1x128xf32>
    %9 = tpu.matmul %8, %2, %cst_12 {dimension_numbers = #tpu.dot_dimension_numbers<[1], [1], [0], [0], [0, 0, 1, 0], [], []>} : vector<1x128xf32>, vector<128x128xf32>, vector<1x128xf32> -> vector<1x128xf32>
    %c0_13 = arith.constant 0 : index
    %c0_14 = arith.constant 0 : index
    %10 = vector.load %arg7[%c0_13, %c0_14] : memref<1x128xf32, #tpu.memory_space<vmem>>, vector<1x128xf32>
    tpu.vector_store %arg7[%c0_13, %c0_14], %9 {strides = array<i32>} : memref<1x128xf32, #tpu.memory_space<vmem>>, vector<1x128xf32>,
    return
  }
  func.func @transform_0(%arg0: i32) -> (i32, i32) {
    %c0_i32 = arith.constant 0 : i32
    %c0_i32_0 = arith.constant 0 : i32
    return %arg0, %c0_i32 : i32, i32
  }
  func.func @transform_1(%arg0: i32) -> (i32, i32) {
    %c0_i32 = arith.constant 0 : i32
    %c0_i32_0 = arith.constant 0 : i32
    %c0_i32_1 = arith.constant 0 : i32
    return %c0_i32, %c0_i32_0 : i32, i32
  }
  func.func @transform_2(%arg0: i32) -> (i32, i32) {
    %c0_i32 = arith.constant 0 : i32
    %c0_i32_0 = arith.constant 0 : i32
    %c0_i32_1 = arith.constant 0 : i32
    return %c0_i32, %c0_i32_0 : i32, i32
  }
  func.func @transform_3(%arg0: i32) -> (i32, i32) {
    %c0_i32 = arith.constant 0 : i32
    %c0_i32_0 = arith.constant 0 : i32
    %c0_i32_1 = arith.constant 0 : i32
    return %c0_i32, %c0_i32_0 : i32, i32
  }
  func.func @transform_4(%arg0: i32) -> (i32, i32) {
    %c0_i32 = arith.constant 0 : i32
    %c0_i32_0 = arith.constant 0 : i32
    return %arg0, %c0_i32 : i32, i32
  }
  func.func @transform_5(%arg0: i32) -> (i32, i32) {
    %c0_i32 = arith.constant 0 : i32
    %c0_i32_0 = arith.constant 0 : i32
    return %arg0, %c0_i32 : i32, i32
  }
  func.func @transform_6(%arg0: i32) -> (i32, i32) {
    %c0_i32 = arith.constant 0 : i32
    %c0_i32_0 = arith.constant 0 : i32
    return %c0_i32, %arg0 : i32, i32
  }
}

</mosaic_0001>

<llo_original>
// kernel: tpu_custom_call.1
$region0: #{tpu_custom_call.1}
  #allocation0 [shape = 'u32[]', space=smem, size = 0x4, offset = 0x4, fixed_abs, tag = 'smem constant byte address 0x4 - core index']
  #allocation1 [shape = 'u32[144,128]{1,0:T(1,128)}', space=vmem, size = 0x12000, scoped, tag = 'internal scratch']
  %s0 = inlined_call_operand.vmem [shape: f32[128,8], index: 0, kind: input, shape index: {}]
  %s1 = inlined_call_operand.vmem [shape: f32[8,128], index: 1, kind: input, shape index: {}]
  %s2 = inlined_call_operand.vmem [shape: f32[128,1], index: 2, kind: input, shape index: {}]
  %s3 = inlined_call_operand.vmem [shape: f32[1,128], index: 3, kind: input, shape index: {}]
  %s4 = inlined_call_operand.hbm [shape: bf16[128,128], index: 4, kind: output, shape index: {0}]
  %s5 = inlined_call_operand.vmem [shape: f32[128,1], index: 5, kind: output, shape index: {1}]
  %s6 = inlined_call_operand.hbm [shape: f32[1,128], index: 6, kind: output, shape index: {2}]
  %7 = xla_tuple %s4, %s5, %s6
  %s8 = sld [smem:[#allocation0]]
  $region42: #{tpu_custom_call.1} parent=0
    _
  %s10 = ssub.s32 1, %s8
  %s11 = scalar_select 0, %s10, %s8
  $region1: #{tpu_custom_call.1} parent=0
    #allocation2 [shape = 'u8[32768]{0}', space=vmem, size = 0x8000, scoped, tag = 'output window, operand 0, single buffered']
    #allocation3 [shape = 's32[1]{0}', space=sflag, size = 0x4, scoped, tag = 'scoped memory for tpu_custom_call.1']
    #allocation4 [shape = 'u8[512]{0}', space=vmem, size = 0x400, scoped, tag = 'output window, operand 2, single buffered']
    #allocation5 [shape = 's32[1]{0}', space=sflag, size = 0x4, scoped, tag = 'scoped memory for tpu_custom_call.1']
    %12 = vsyncpa [#allocation3], 0
    %13 = vsyncpa [#allocation5], 0
    // Predicated region
    $region2: #{tpu_custom_call.1} parent=1 // pred_check
      _
    $region3: #{tpu_custom_call.1} parent=1 // pred_check_branch
      %15 = sbr.rel (0) target = $region5
    $region4: #{tpu_custom_call.1} parent=1 // pred_region
      _
    $region5: #{tpu_custom_call.1} parent=1 // pred_fallthru
      _
    // Predicated region
    $region6: #{tpu_custom_call.1} parent=1 // pred_check
      _
    $region7: #{tpu_custom_call.1} parent=1 // pred_check_branch
      %17 = sbr.rel (0) target = $region9
    $region8: #{tpu_custom_call.1} parent=1 // pred_region
      _
    $region9: #{tpu_custom_call.1} parent=1 // pred_fallthru
      _
    // Predicated region
    $region10: #{tpu_custom_call.1} parent=1 // pred_check
      _
    $region11: #{tpu_custom_call.1} parent=1 // pred_check_branch
      %19 = sbr.rel (0) target = $region13
    $region12: #{tpu_custom_call.1} parent=1 // pred_region
      _
    $region13: #{tpu_custom_call.1} parent=1 // pred_fallthru
      _
    // Predicated region
    $region14: #{tpu_custom_call.1} parent=1 // pred_check
      _
    $region15: #{tpu_custom_call.1} parent=1 // pred_check_branch
      %21 = sbr.rel (0) target = $region17
    $region16: #{tpu_custom_call.1} parent=1 // pred_region
      _
    $region17: #{tpu_custom_call.1} parent=1 // pred_fallthru
      _
    %v22 = vld [vmem:[%s0] sm:$0xff]
    %v23 = vld [vmem:[%s0 + $0x8] sm:$0xff]
    %v24 = vld [vmem:[%s0 + $0x10] sm:$0xff]
    %v25 = vld [vmem:[%s0 + $0x18] sm:$0xff]
    %v26 = vld [vmem:[%s0 + $0x20] sm:$0xff]
    %v27 = vld [vmem:[%s0 + $0x28] sm:$0xff]
    %v28 = vld [vmem:[%s0 + $0x30] sm:$0xff]
    %v29 = vld [vmem:[%s0 + $0x38] sm:$0xff]
    %v30 = vld [vmem:[%s0 + $0x40] sm:$0xff]
    %v31 = vld [vmem:[%s0 + $0x48] sm:$0xff]
    %v32 = vld [vmem:[%s0 + $0x50] sm:$0xff]
    %v33 = vld [vmem:[%s0 + $0x58] sm:$0xff]
    %v34 = vld [vmem:[%s0 + $0x60] sm:$0xff]
    %v35 = vld [vmem:[%s0 + $0x68] sm:$0xff]
    %v36 = vld [vmem:[%s0 + $0x70] sm:$0xff]
    %v37 = vld [vmem:[%s0 + $0x78] sm:$0xff]
    %v38 = vld [vmem:[%s1] sm:$0xff]
    %vm39 = vcmask 64512
    %v41 = vsel %vm39, %v22, 0
    %v44 = vsel %vm39, %v23, 0
    %v47 = vsel %vm39, %v24, 0
    %v50 = vsel %vm39, %v25, 0
    %v53 = vsel %vm39, %v26, 0
    %v56 = vsel %vm39, %v27, 0
    %v59 = vsel %vm39, %v28, 0
    %v62 = vsel %vm39, %v29, 0
    %v65 = vsel %vm39, %v30, 0
    %v68 = vsel %vm39, %v31, 0
    %v71 = vsel %vm39, %v32, 0
    %v74 = vsel %vm39, %v33, 0
    %v77 = vsel %vm39, %v34, 0
    %v80 = vsel %vm39, %v35, 0
    %v83 = vsel %vm39, %v36, 0
    %v86 = vsel %vm39, %v37, 0
    %88 = vmatprep.subr.mxu0 0.0
    %89 = vmatpush1.msra.mxu0 %v38
    %90 = vmatprep.subr.mxu0 0.0
    %91 = vmatpush1.msra.mxu0 0.0
    %92 = vmatprep.subr.mxu0 0.0
    %93 = vmatpush1.msra.mxu0 0.0
    %94 = vmatprep.subr.mxu0 0.0
    %95 = vmatpush1.msra.mxu0 0.0
    %96 = vmatprep.subr.mxu0 0.0
    %97 = vmatpush1.msra.mxu0 0.0
    %98 = vmatprep.subr.mxu0 0.0
    %99 = vmatpush1.msra.mxu0 0.0
    %100 = vmatprep.subr.mxu0 0.0
    %101 = vmatpush1.msra.mxu0 0.0
    %102 = vmatprep.subr.mxu0 0.0
    %103 = vmatpush1.msra.mxu0 0.0
    %104 = vmatprep.subr.mxu0 0.0
    %105 = vmatpush1.msra.mxu0 0.0
    %106 = vmatprep.subr.mxu0 0.0
    %107 = vmatpush1.msra.mxu0 0.0
    %108 = vmatprep.subr.mxu0 0.0
    %109 = vmatpush1.msra.mxu0 0.0
    %110 = vmatprep.subr.mxu0 0.0
    %111 = vmatpush1.msra.mxu0 0.0
    %112 = vmatprep.subr.mxu0 0.0
    %113 = vmatpush1.msra.mxu0 0.0
    %114 = vmatprep.subr.mxu0 0.0
    %115 = vmatpush1.msra.mxu0 0.0
    %116 = vmatprep.subr.mxu0 0.0
    %117 = vmatpush1.msra.mxu0 0.0
    %118 = vmatprep.subr.mxu0 0.0
    %119 = vmatpush1.msra.mxu0 0.0
    %120 = vmatprep.subr.mxu0 0.0
    %121 = vmatpush1.msra.mxu0 0.0
    %122 = vmatprep.subr.mxu0 0.0
    %123 = vmatpush1.msra.mxu0 0.0
    %124 = vmatprep.subr.mxu0 0.0
    %125 = vmatpush1.msra.mxu0 0.0
    %126 = vmatprep.subr.mxu0 0.0
    %127 = vmatpush1.msra.mxu0 0.0
    %128 = vmatprep.subr.mxu0 0.0
    %129 = vmatpush1.msra.mxu0 0.0
    %130 = vmatprep.subr.mxu0 0.0
    %131 = vmatpush1.msra.mxu0 0.0
    %132 = vmatprep.subr.mxu0 0.0
    %133 = vmatpush1.msra.mxu0 0.0
    %134 = vmatprep.subr.mxu0 0.0
    %135 = vmatpush1.msra.mxu0 0.0
    %136 = vmatprep.subr.mxu0 0.0
    %137 = vmatpush1.msra.mxu0 0.0
    %138 = vmatprep.subr.mxu0 0.0
    %139 = vmatpush1.msra.mxu0 0.0
    %140 = vmatprep.subr.mxu0 0.0
    %141 = vmatpush1.msra.mxu0 0.0
    %142 = vmatprep.subr.mxu0 0.0
    %143 = vmatpush1.msra.mxu0 0.0
    %144 = vmatprep.subr.mxu0 0.0
    %145 = vmatpush1.msra.mxu0 0.0
    %146 = vmatprep.subr.mxu0 0.0
    %147 = vmatpush1.msra.mxu0 0.0
    %148 = vmatprep.subr.mxu0 0.0
    %149 = vmatpush1.msra.mxu0 0.0
    %150 = vmatprep.subr.mxu0 0.0
    %151 = vmatpush1.msra.mxu0 0.0
    %152 = vmatprep.mubr.f32.mxu0 0.0
    %153 = vmatmul.mubr.f32.gmra.mrb[0].mxu0 %v41
    %v154 = vpop.f32.mrb[0].mxu0
    %v155 = vadd.f32 0.0, %v154
    %v156 = vpop.f32.mrb[0].mxu0
    %157 = vmatprep.mubr.f32.mxu0 0.0
    %158 = vmatmul.mubr.f32.gmra.mrb[0].mxu0 %v44
    %v159 = vpop.f32.mrb[0].mxu0
    %v160 = vadd.f32 0.0, %v159
    %v161 = vpop.f32.mrb[0].mxu0
    %162 = vmatprep.mubr.f32.mxu0 0.0
    %163 = vmatmul.mubr.f32.gmra.mrb[0].mxu0 %v47
    %v164 = vpop.f32.mrb[0].mxu0
    %v165 = vadd.f32 0.0, %v164
    %v166 = vpop.f32.mrb[0].mxu0
    %167 = vmatprep.mubr.f32.mxu0 0.0
    %168 = vmatmul.mubr.f32.gmra.mrb[0].mxu0 %v50
    %v169 = vpop.f32.mrb[0].mxu0
    %v170 = vadd.f32 0.0, %v169
    %v171 = vpop.f32.mrb[0].mxu0
    %172 = vmatprep.mubr.f32.mxu0 0.0
    %173 = vmatmul.mubr.f32.gmra.mrb[0].mxu0 %v53
    %v174 = vpop.f32.mrb[0].mxu0
    %v175 = vadd.f32 0.0, %v174
    %v176 = vpop.f32.mrb[0].mxu0
    %177 = vmatprep.mubr.f32.mxu0 0.0
    %178 = vmatmul.mubr.f32.gmra.mrb[0].mxu0 %v56
    %v179 = vpop.f32.mrb[0].mxu0
    %v180 = vadd.f32 0.0, %v179
    %v181 = vpop.f32.mrb[0].mxu0
    %182 = vmatprep.mubr.f32.mxu0 0.0
    %183 = vmatmul.mubr.f32.gmra.mrb[0].mxu0 %v59
    %v184 = vpop.f32.mrb[0].mxu0
    %v185 = vadd.f32 0.0, %v184
    %v186 = vpop.f32.mrb[0].mxu0
    %187 = vmatprep.mubr.f32.mxu0 0.0
    %188 = vmatmul.mubr.f32.gmra.mrb[0].mxu0 %v62
    %v189 = vpop.f32.mrb[0].mxu0
    %v190 = vadd.f32 0.0, %v189
    %v191 = vpop.f32.mrb[0].mxu0
    %192 = vmatprep.mubr.f32.mxu0 0.0
    %193 = vmatmul.mubr.f32.gmra.mrb[0].mxu0 %v65
    %v194 = vpop.f32.mrb[0].mxu0
    %v195 = vadd.f32 0.0, %v194
    %v196 = vpop.f32.mrb[0].mxu0
    %197 = vmatprep.mubr.f32.mxu0 0.0
    %198 = vmatmul.mubr.f32.gmra.mrb[0].mxu0 %v68
    %v199 = vpop.f32.mrb[0].mxu0
    %v200 = vadd.f32 0.0, %v199
    %v201 = vpop.f32.mrb[0].mxu0
    %202 = vmatprep.mubr.f32.mxu0 0.0
    %203 = vmatmul.mubr.f32.gmra.mrb[0].mxu0 %v71
    %v204 = vpop.f32.mrb[0].mxu0
    %v205 = vadd.f32 0.0, %v204
    %v206 = vpop.f32.mrb[0].mxu0
    %207 = vmatprep.mubr.f32.mxu0 0.0
    %208 = vmatmul.mubr.f32.gmra.mrb[0].mxu0 %v74
    %v209 = vpop.f32.mrb[0].mxu0
    %v210 = vadd.f32 0.0, %v209
    %v211 = vpop.f32.mrb[0].mxu0
    %212 = vmatprep.mubr.f32.mxu0 0.0
    %213 = vmatmul.mubr.f32.gmra.mrb[0].mxu0 %v77
    %v214 = vpop.f32.mrb[0].mxu0
    %v215 = vadd.f32 0.0, %v214
    %v216 = vpop.f32.mrb[0].mxu0
    %217 = vmatprep.mubr.f32.mxu0 0.0
    %218 = vmatmul.mubr.f32.gmra.mrb[0].mxu0 %v80
    %v219 = vpop.f32.mrb[0].mxu0
    %v220 = vadd.f32 0.0, %v219
    %v221 = vpop.f32.mrb[0].mxu0
    %222 = vmatprep.mubr.f32.mxu0 0.0
    %223 = vmatmul.mubr.f32.gmra.mrb[0].mxu0 %v83
    %v224 = vpop.f32.mrb[0].mxu0
    %v225 = vadd.f32 0.0, %v224
    %v226 = vpop.f32.mrb[0].mxu0
    %227 = vmatprep.mubr.f32.mxu0 0.0
    %228 = vmatmul.mubr.f32.gmra.mrb[0].mxu0 %v86
    %v229 = vpop.f32.mrb[0].mxu0
    %v230 = vadd.f32 0.0, %v229
    %v231 = vpop.f32.mrb[0].mxu0
    %232 = vdwg.mxu0
    %v233 = vpack.c.bf16 %v160, %v155
    %v234 = vpack.c.bf16 %v170, %v165
    %v235 = vpack.c.bf16 %v180, %v175
    %v236 = vpack.c.bf16 %v190, %v185
    %v237 = vpack.c.bf16 %v200, %v195
    %v238 = vpack.c.bf16 %v210, %v205
    %v239 = vpack.c.bf16 %v220, %v215
    %v240 = vpack.c.bf16 %v230, %v225
    %v249 = vunpack.c.l.b16 %v233
    %v250 = vunpack.c.h.b16 %v233
    %v251 = vunpack.c.l.b16 %v234
    %v252 = vunpack.c.h.b16 %v234
    %v253 = vunpack.c.l.b16 %v235
    %v254 = vunpack.c.h.b16 %v235
    %v255 = vunpack.c.l.b16 %v236
    %v256 = vunpack.c.h.b16 %v236
    %v257 = vunpack.c.l.b16 %v237
    %v258 = vunpack.c.h.b16 %v237
    %v259 = vunpack.c.l.b16 %v238
    %v260 = vunpack.c.h.b16 %v238
    %v261 = vunpack.c.l.b16 %v239
    %v262 = vunpack.c.h.b16 %v239
    %v263 = vunpack.c.l.b16 %v240
    %v264 = vunpack.c.h.b16 %v240
    %v265 = vpack.c.b16 %v249, %v249
    %v266 = vpack.c.b16 %v250, %v250
    %v267 = vpack.c.b16 %v251, %v251
    %v268 = vpack.c.b16 %v252, %v252
    %v269 = vpack.c.b16 %v253, %v253
    %v270 = vpack.c.b16 %v254, %v254
    %v271 = vpack.c.b16 %v255, %v255
    %v272 = vpack.c.b16 %v256, %v256
    %v273 = vpack.c.b16 %v257, %v257
    %v274 = vpack.c.b16 %v258, %v258
    %v275 = vpack.c.b16 %v259, %v259
    %v276 = vpack.c.b16 %v260, %v260
    %v277 = vpack.c.b16 %v261, %v261
    %v278 = vpack.c.b16 %v262, %v262
    %v279 = vpack.c.b16 %v263, %v263
    %v280 = vpack.c.b16 %v264, %v264
    %297 = vst [vmem:[#allocation2] sm:$0xf] %v265
    %298 = vst [vmem:[#allocation2 + $0x4] sm:$0xf] %v266
    %299 = vst [vmem:[#allocation2 + $0x8] sm:$0xf] %v267
    %300 = vst [vmem:[#allocation2 + $0xc] sm:$0xf] %v268
    %301 = vst [vmem:[#allocation2 + $0x10] sm:$0xf] %v269
    %302 = vst [vmem:[#allocation2 + $0x14] sm:$0xf] %v270
    %303 = vst [vmem:[#allocation2 + $0x18] sm:$0xf] %v271
    %304 = vst [vmem:[#allocation2 + $0x1c] sm:$0xf] %v272
    %305 = vst [vmem:[#allocation2 + $0x20] sm:$0xf] %v273
    %306 = vst [vmem:[#allocation2 + $0x24] sm:$0xf] %v274
    %307 = vst [vmem:[#allocation2 + $0x28] sm:$0xf] %v275
    %308 = vst [vmem:[#allocation2 + $0x2c] sm:$0xf] %v276
    %309 = vst [vmem:[#allocation2 + $0x30] sm:$0xf] %v277
    %310 = vst [vmem:[#allocation2 + $0x34] sm:$0xf] %v278
    %311 = vst [vmem:[#allocation2 + $0x38] sm:$0xf] %v279
    %312 = vst [vmem:[#allocation2 + $0x3c] sm:$0xf] %v280
    %v313 = vld [vmem:[%s2] sm:$0xff]
    %v314 = vld [vmem:[%s2 + $0x8] sm:$0xff]
    %v315 = vld [vmem:[%s2 + $0x10] sm:$0xff]
    %v316 = vld [vmem:[%s2 + $0x18] sm:$0xff]
    %v317 = vld [vmem:[%s2 + $0x20] sm:$0xff]
    %v318 = vld [vmem:[%s2 + $0x28] sm:$0xff]
    %v319 = vld [vmem:[%s2 + $0x30] sm:$0xff]
    %v320 = vld [vmem:[%s2 + $0x38] sm:$0xff]
    %v321 = vld [vmem:[%s2 + $0x40] sm:$0xff]
    %v322 = vld [vmem:[%s2 + $0x48] sm:$0xff]
    %v323 = vld [vmem:[%s2 + $0x50] sm:$0xff]
    %v324 = vld [vmem:[%s2 + $0x58] sm:$0xff]
    %v325 = vld [vmem:[%s2 + $0x60] sm:$0xff]
    %v326 = vld [vmem:[%s2 + $0x68] sm:$0xff]
    %v327 = vld [vmem:[%s2 + $0x70] sm:$0xff]
    %v328 = vld [vmem:[%s2 + $0x78] sm:$0xff]
    %329 = vmatprep.subr.mxu0 0.0
    %330 = vmatpush1.msra.mxu0 %v313
    %331 = vmatprep.subr.mxu0 0.0
    %332 = vmatpush1.msra.mxu0 %v314
    %333 = vmatprep.subr.mxu0 0.0
    %334 = vmatpush1.msra.mxu0 %v315
    %335 = vmatprep.subr.mxu0 0.0
    %336 = vmatpush1.msra.mxu0 %v316
    %337 = vmatprep.subr.mxu0 0.0
    %338 = vmatpush1.msra.mxu0 %v317
    %339 = vmatprep.subr.mxu0 0.0
    %340 = vmatpush1.msra.mxu0 %v318
    %341 = vmatprep.subr.mxu0 0.0
    %342 = vmatpush1.msra.mxu0 %v319
    %343 = vmatprep.subr.mxu0 0.0
    %344 = vmatpush1.msra.mxu0 %v320
    %345 = vmatprep.subr.mxu0 0.0
    %346 = vmatpush1.msra.mxu0 %v321
    %347 = vmatprep.subr.mxu0 0.0
    %348 = vmatpush1.msra.mxu0 %v322
    %349 = vmatprep.subr.mxu0 0.0
    %350 = vmatpush1.msra.mxu0 %v323
    %351 = vmatprep.subr.mxu0 0.0
    %352 = vmatpush1.msra.mxu0 %v324
    %353 = vmatprep.subr.mxu0 0.0
    %354 = vmatpush1.msra.mxu0 %v325
    %355 = vmatprep.subr.mxu0 0.0
    %356 = vmatpush1.msra.mxu0 %v326
    %357 = vmatprep.subr.mxu0 0.0
    %358 = vmatpush1.msra.mxu0 %v327
    %359 = vmatprep.subr.mxu0 0.0
    %360 = vmatpush1.msra.mxu0 %v328
    %361 = vmatprep.subr.mxu0 0.0
    %362 = vmatpush1.msra.mxu0 0.0
    %363 = vmatprep.subr.mxu0 0.0
    %364 = vmatpush1.msra.mxu0 0.0
    %365 = vmatprep.subr.mxu0 0.0
    %366 = vmatpush1.msra.mxu0 0.0
    %367 = vmatprep.subr.mxu0 0.0
    %368 = vmatpush1.msra.mxu0 0.0
    %369 = vmatprep.subr.mxu0 0.0
    %370 = vmatpush1.msra.mxu0 0.0
    %371 = vmatprep.subr.mxu0 0.0
    %372 = vmatpush1.msra.mxu0 0.0
    %373 = vmatprep.subr.mxu0 0.0
    %374 = vmatpush1.msra.mxu0 0.0
    %375 = vmatprep.subr.mxu0 0.0
    %376 = vmatpush1.msra.mxu0 0.0
    %377 = vmatprep.subr.mxu0 0.0
    %378 = vmatpush1.msra.mxu0 0.0
    %379 = vmatprep.subr.mxu0 0.0
    %380 = vmatpush1.msra.mxu0 0.0
    %381 = vmatprep.subr.mxu0 0.0
    %382 = vmatpush1.msra.mxu0 0.0
    %383 = vmatprep.subr.mxu0 0.0
    %384 = vmatpush1.msra.mxu0 0.0
    %385 = vmatprep.subr.mxu0 0.0
    %386 = vmatpush1.msra.mxu0 0.0
    %387 = vmatprep.subr.mxu0 0.0
    %388 = vmatpush1.msra.mxu0 0.0
    %389 = vmatprep.subr.mxu0 0.0
    %390 = vmatpush1.msra.mxu0 0.0
    %391 = vmatprep.subr.mxu0 0.0
    %392 = vmatpush1.msra.mxu0 0.0
    %393 = vmatprep.mubr.f32.mxu0 0.0
    %394 = vmatmul.mubr.f32.gmra.mrb[0].mxu0 %v155
    %v395 = vpop.f32.mrb[0].mxu0
    %v396 = vadd.f32 0.0, %v395
    %v397 = vpop.f32.mrb[0].mxu0
    %398 = vmatprep.mubr.f32.mxu0 0.0
    %399 = vmatmul.mubr.f32.gmra.mrb[0].mxu0 %v160
    %v400 = vpop.f32.mrb[0].mxu0
    %v401 = vadd.f32 0.0, %v400
    %v402 = vpop.f32.mrb[0].mxu0
    %403 = vmatprep.mubr.f32.mxu0 0.0
    %404 = vmatmul.mubr.f32.gmra.mrb[0].mxu0 %v165
    %v405 = vpop.f32.mrb[0].mxu0
    %v406 = vadd.f32 0.0, %v405
    %v407 = vpop.f32.mrb[0].mxu0
    %408 = vmatprep.mubr.f32.mxu0 0.0
    %409 = vmatmul.mubr.f32.gmra.mrb[0].mxu0 %v170
    %v410 = vpop.f32.mrb[0].mxu0
    %v411 = vadd.f32 0.0, %v410
    %v412 = vpop.f32.mrb[0].mxu0
    %413 = vmatprep.mubr.f32.mxu0 0.0
    %414 = vmatmul.mubr.f32.gmra.mrb[0].mxu0 %v175
    %v415 = vpop.f32.mrb[0].mxu0
    %v416 = vadd.f32 0.0, %v415
    %v417 = vpop.f32.mrb[0].mxu0
    %418 = vmatprep.mubr.f32.mxu0 0.0
    %419 = vmatmul.mubr.f32.gmra.mrb[0].mxu0 %v180
    %v420 = vpop.f32.mrb[0].mxu0
    %v421 = vadd.f32 0.0, %v420
    %v422 = vpop.f32.mrb[0].mxu0
    %423 = vmatprep.mubr.f32.mxu0 0.0
    %424 = vmatmul.mubr.f32.gmra.mrb[0].mxu0 %v185
    %v425 = vpop.f32.mrb[0].mxu0
    %v426 = vadd.f32 0.0, %v425
    %v427 = vpop.f32.mrb[0].mxu0
    %428 = vmatprep.mubr.f32.mxu0 0.0
    %429 = vmatmul.mubr.f32.gmra.mrb[0].mxu0 %v190
    %v430 = vpop.f32.mrb[0].mxu0
    %v431 = vadd.f32 0.0, %v430
    %v432 = vpop.f32.mrb[0].mxu0
    %433 = vmatprep.mubr.f32.mxu0 0.0
    %434 = vmatmul.mubr.f32.gmra.mrb[0].mxu0 %v195
    %v435 = vpop.f32.mrb[0].mxu0
    %v436 = vadd.f32 0.0, %v435
    %v437 = vpop.f32.mrb[0].mxu0
    %438 = vmatprep.mubr.f32.mxu0 0.0
    %439 = vmatmul.mubr.f32.gmra.mrb[0].mxu0 %v200
    %v440 = vpop.f32.mrb[0].mxu0
    %v441 = vadd.f32 0.0, %v440
    %v442 = vpop.f32.mrb[0].mxu0
    %443 = vmatprep.mubr.f32.mxu0 0.0
    %444 = vmatmul.mubr.f32.gmra.mrb[0].mxu0 %v205
    %v445 = vpop.f32.mrb[0].mxu0
    %v446 = vadd.f32 0.0, %v445
    %v447 = vpop.f32.mrb[0].mxu0
    %448 = vmatprep.mubr.f32.mxu0 0.0
    %449 = vmatmul.mubr.f32.gmra.mrb[0].mxu0 %v210
    %v450 = vpop.f32.mrb[0].mxu0
    %v451 = vadd.f32 0.0, %v450
    %v452 = vpop.f32.mrb[0].mxu0
    %453 = vmatprep.mubr.f32.mxu0 0.0
    %454 = vmatmul.mubr.f32.gmra.mrb[0].mxu0 %v215
    %v455 = vpop.f32.mrb[0].mxu0
    %v456 = vadd.f32 0.0, %v455
    %v457 = vpop.f32.mrb[0].mxu0
    %458 = vmatprep.mubr.f32.mxu0 0.0
    %459 = vmatmul.mubr.f32.gmra.mrb[0].mxu0 %v220
    %v460 = vpop.f32.mrb[0].mxu0
    %v461 = vadd.f32 0.0, %v460
    %v462 = vpop.f32.mrb[0].mxu0
    %463 = vmatprep.mubr.f32.mxu0 0.0
    %464 = vmatmul.mubr.f32.gmra.mrb[0].mxu0 %v225
    %v465 = vpop.f32.mrb[0].mxu0
    %v466 = vadd.f32 0.0, %v465
    %v467 = vpop.f32.mrb[0].mxu0
    %468 = vmatprep.mubr.f32.mxu0 0.0
    %469 = vmatmul.mubr.f32.gmra.mrb[0].mxu0 %v230
    %v470 = vpop.f32.mrb[0].mxu0
    %v471 = vadd.f32 0.0, %v470
    %v472 = vpop.f32.mrb[0].mxu0
    %473 = vdwg.mxu0
    %vm474 = vcmask 7168
    %475 = vst.msk [vmem:[%s5] sm:$0xff] %vm474, %v396
    %476 = vst.msk [vmem:[%s5 + $0x8] sm:$0xff] %vm474, %v401
    %477 = vst.msk [vmem:[%s5 + $0x10] sm:$0xff] %vm474, %v406
    %478 = vst.msk [vmem:[%s5 + $0x18] sm:$0xff] %vm474, %v411
    %479 = vst.msk [vmem:[%s5 + $0x20] sm:$0xff] %vm474, %v416
    %480 = vst.msk [vmem:[%s5 + $0x28] sm:$0xff] %vm474, %v421
    %481 = vst.msk [vmem:[%s5 + $0x30] sm:$0xff] %vm474, %v426
    %482 = vst.msk [vmem:[%s5 + $0x38] sm:$0xff] %vm474, %v431
    %483 = vst.msk [vmem:[%s5 + $0x40] sm:$0xff] %vm474, %v436
    %484 = vst.msk [vmem:[%s5 + $0x48] sm:$0xff] %vm474, %v441
    %485 = vst.msk [vmem:[%s5 + $0x50] sm:$0xff] %vm474, %v446
    %486 = vst.msk [vmem:[%s5 + $0x58] sm:$0xff] %vm474, %v451
    %487 = vst.msk [vmem:[%s5 + $0x60] sm:$0xff] %vm474, %v456
    %488 = vst.msk [vmem:[%s5 + $0x68] sm:$0xff] %vm474, %v461
    %489 = vst.msk [vmem:[%s5 + $0x70] sm:$0xff] %vm474, %v466
    %490 = vst.msk [vmem:[%s5 + $0x78] sm:$0xff] %vm474, %v471
    %v491 = vld [vmem:[%s3] sm:$0x1]
    %492 = vmatprep.subr.mxu0 0.0
    %493 = vmatpush1.xpose.msra.mxu0 %v155
    %494 = vmatprep.subr.mxu0 0.0
    %495 = vmatpush1.xpose.msra.mxu0 %v160
    %496 = vmatprep.subr.mxu0 0.0
    %497 = vmatpush1.xpose.msra.mxu0 %v165
    %498 = vmatprep.subr.mxu0 0.0
    %499 = vmatpush1.xpose.msra.mxu0 %v170
    %500 = vmatprep.subr.mxu0 0.0
    %501 = vmatpush1.xpose.msra.mxu0 %v175
    %502 = vmatprep.subr.mxu0 0.0
    %503 = vmatpush1.xpose.msra.mxu0 %v180
    %504 = vmatprep.subr.mxu0 0.0
    %505 = vmatpush1.xpose.msra.mxu0 %v185
    %506 = vmatprep.subr.mxu0 0.0
    %507 = vmatpush1.xpose.msra.mxu0 %v190
    %508 = vmatprep.subr.mxu0 0.0
    %509 = vmatpush1.xpose.msra.mxu0 %v195
    %510 = vmatprep.subr.mxu0 0.0
    %511 = vmatpush1.xpose.msra.mxu0 %v200
    %512 = vmatprep.subr.mxu0 0.0
    %513 = vmatpush1.xpose.msra.mxu0 %v205
    %514 = vmatprep.subr.mxu0 0.0
    %515 = vmatpush1.xpose.msra.mxu0 %v210
    %516 = vmatprep.subr.mxu0 0.0
    %517 = vmatpush1.xpose.msra.mxu0 %v215
    %518 = vmatprep.subr.mxu0 0.0
    %519 = vmatpush1.xpose.msra.mxu0 %v220
    %520 = vmatprep.subr.mxu0 0.0
    %521 = vmatpush1.xpose.msra.mxu0 %v225
    %522 = vmatprep.subr.mxu0 0.0
    %523 = vmatpush1.xpose.msra.mxu0 %v230
    %524 = vmatprep.subr.mxu0 0.0
    %525 = vmatpush1.xpose.msra.mxu0 0.0
    %526 = vmatprep.subr.mxu0 0.0
    %527 = vmatpush1.xpose.msra.mxu0 0.0
    %528 = vmatprep.subr.mxu0 0.0
    %529 = vmatpush1.xpose.msra.mxu0 0.0
    %530 = vmatprep.subr.mxu0 0.0
    %531 = vmatpush1.xpose.msra.mxu0 0.0
    %532 = vmatprep.subr.mxu0 0.0
    %533 = vmatpush1.xpose.msra.mxu0 0.0
    %534 = vmatprep.subr.mxu0 0.0
    %535 = vmatpush1.xpose.msra.mxu0 0.0
    %536 = vmatprep.subr.mxu0 0.0
    %537 = vmatpush1.xpose.msra.mxu0 0.0
    %538 = vmatprep.subr.mxu0 0.0
    %539 = vmatpush1.xpose.msra.mxu0 0.0
    %540 = vmatprep.subr.mxu0 0.0
    %541 = vmatpush1.xpose.msra.mxu0 0.0
    %542 = vmatprep.subr.mxu0 0.0
    %543 = vmatpush1.xpose.msra.mxu0 0.0
    %544 = vmatprep.subr.mxu0 0.0
    %545 = vmatpush1.xpose.msra.mxu0 0.0
    %546 = vmatprep.subr.mxu0 0.0
    %547 = vmatpush1.xpose.msra.mxu0 0.0
    %548 = vmatprep.subr.mxu0 0.0
    %549 = vmatpush1.xpose.msra.mxu0 0.0
    %550 = vmatprep.subr.mxu0 0.0
    %551 = vmatpush1.xpose.msra.mxu0 0.0
    %552 = vmatprep.subr.mxu0 0.0
    %553 = vmatpush1.xpose.msra.mxu0 0.0
    %554 = vmatprep.subr.mxu0 0.0
    %555 = vmatpush1.xpose.msra.mxu0 0.0
    %556 = vmatprep.mubr.f32.mxu0 0.0
    %557 = vmatmul.mubr.f32.gmra.mrb[0].mxu0 %v491
    %v558 = vpop.f32.mrb[0].mxu0
    %v559 = vadd.f32 0.0, %v558
    %v560 = vpop.f32.mrb[0].mxu0
    %561 = vdwg.mxu0
    %562 = vst [vmem:[#allocation4] sm:$0x1] %v559
    // Predicated region
    $region18: #{tpu_custom_call.1} parent=1 // pred_check
      _
    $region19: #{tpu_custom_call.1} parent=1 // pred_check_branch
      %564 = sbr.rel (0) target = $region21
    $region20: #{tpu_custom_call.1} parent=1 // pred_region
      %s566 = ssub.s32 1024, 1024
      %567 = vsyncadd [#allocation3], %s566
      %s568 = sshll.u32 [#allocation2], 4
      %s569 = int_to_ptr.vmem [resolvable:$true] %s568
      %574 = dma.vmem_to_hbm [thread:$0]  %s569, 1024, %s4, [#allocation3], 64, 64, 4
    $region21: #{tpu_custom_call.1} parent=1 // pred_fallthru
      _
    // Predicated region
    $region22: #{tpu_custom_call.1} parent=1 // pred_check
      _
    $region23: #{tpu_custom_call.1} parent=1 // pred_check_branch
      %576 = sbr.rel (0) target = $region25
    $region24: #{tpu_custom_call.1} parent=1 // pred_region
      _
    $region25: #{tpu_custom_call.1} parent=1 // pred_fallthru
      _
    // Predicated region
    $region26: #{tpu_custom_call.1} parent=1 // pred_check
      _
    $region27: #{tpu_custom_call.1} parent=1 // pred_check_branch
      %578 = sbr.rel (0) target = $region29
    $region28: #{tpu_custom_call.1} parent=1 // pred_region
      %s580 = ssub.s32 16, 16
      %581 = vsyncadd [#allocation5], %s580
      %s583 = sshll.u32 [#allocation4], 4
      %s584 = int_to_ptr.vmem [resolvable:$true] %s583
      %586 = dma.vmem_to_hbm [thread:$0]  %s584, 16, %s6, [#allocation5]
    $region29: #{tpu_custom_call.1} parent=1 // pred_fallthru
      _
    // Predicated region
    $region30: #{tpu_custom_call.1} parent=1 // pred_check
      _
    $region31: #{tpu_custom_call.1} parent=1 // pred_check_branch
      %588 = sbr.rel (0) target = $region33
    $region32: #{tpu_custom_call.1} parent=1 // pred_region
      %589 = dma.done [#allocation3], 1024
    $region33: #{tpu_custom_call.1} parent=1 // pred_fallthru
      _
    // Predicated region
    $region34: #{tpu_custom_call.1} parent=1 // pred_check
      _
    $region35: #{tpu_custom_call.1} parent=1 // pred_check_branch
      %591 = sbr.rel (0) target = $region37
    $region36: #{tpu_custom_call.1} parent=1 // pred_region
      _
    $region37: #{tpu_custom_call.1} parent=1 // pred_fallthru
      _
    // Predicated region
    $region38: #{tpu_custom_call.1} parent=1 // pred_check
      _
    $region39: #{tpu_custom_call.1} parent=1 // pred_check_branch
      %593 = sbr.rel (0) target = $region41
    $region40: #{tpu_custom_call.1} parent=1 // pred_region
      %594 = dma.done [#allocation5], 16
    $region41: #{tpu_custom_call.1} parent=1 // pred_fallthru
      _
    %595 = vsyncpa [#allocation3], 1
    %596 = vsyncpa [#allocation5], 1

</llo_original>
